<compile_context>
chip_gen: v7x
topology: tpu7x:2x2x1
jax: 0.10.0
libtpu: 0.0.40
codegen_flags: <defaults>
</compile_context>

<pallas_src>
import jax
import jax.numpy as jnp
from jax.experimental import pallas as pl
from jax.experimental.pallas import tpu as pltpu


def _self_attention_kernel(x_ref, w_ref, b_ref, u_ref, out_ref):
    # x_ref:   (BB, T, H)  block of batch rows
    # w_ref:   (H, A)
    # b_ref:   (1, A)
    # u_ref:   (1, A)
    # out_ref: (BB, H)
    BB, T, H = x_ref.shape
    A = w_ref.shape[1]

    x = x_ref[...]                                   # (BB, T, H)  f32
    # Merge (BB, T) -> rows for one fused MXU matmul.  With T a multiple of 8
    # (sublane tile) this is layout-preserving (no VMEM relayout copy).
    x2d = x.reshape(BB * T, H)

    # First projection on the MXU, tanh on EUP/VPU.
    v = jnp.tanh(
        jnp.dot(x2d, w_ref[...], preferred_element_type=jnp.float32)
        + b_ref[...]                                 # (1, A) broadcast
    )                                                # (BB*T, A)
    v3 = v.reshape(BB, T, A)

    # vu = v . u_omega  (lane reduce over A) -> one column per (batch, t).
    vu = jnp.sum(v3 * u_ref[...], axis=-1, keepdims=True)    # (BB, T, 1)

    # Softmax over the sequence dimension T (sublane reductions only).
    m = jnp.max(vu, axis=1, keepdims=True)                   # (BB, 1, 1)
    e = jnp.exp(vu - m)                                       # (BB, T, 1)
    denom = jnp.sum(e, axis=1, keepdims=True)                 # (BB, 1, 1)
    alphas = e * pl.reciprocal(denom, approx=True)            # (BB, T, 1)

    # Weighted sum over T: lane-broadcast multiply + sublane reduce.
    out = jnp.sum(x * alphas, axis=1)                         # (BB, H)
    out_ref[...] = out.astype(out_ref.dtype)


def self_attention_layer(inputs, w_omega, b_omega, u_omega, *, block_b=None):
    """inputs: (B, T, H) float32. Returns (B, H) float32."""
    B, T, H = inputs.shape
    A = w_omega.shape[1]

    if block_b is None:
        itemsize = jnp.dtype(inputs.dtype).itemsize
        bytes_per_row = T * H * itemsize
        # (a) ~2 MiB input tile per grid step (amortize ~0.35 us/step overhead)
        bb_bytes = max(1, (2 * 1024 * 1024) // bytes_per_row)
        # (b) at least 256 MXU LHS rows per step (256-wide v6e/v7x MXU)
        bb_mxu = max(1, pl.cdiv(256, T))
        bb = max(bb_bytes, bb_mxu)
        # (c) VMEM cap: double-buffered input tile must stay well inside the
        #     v7x scoped-VMEM budget (conservative 8 MiB for the input stream).
        bb_cap = max(1, (8 * 1024 * 1024) // (2 * bytes_per_row))
        bb = min(bb, bb_cap)
        if bb >= B:
            block_b = B
        else:
            # keep the output-block sublane dim 8-aligned across grid steps
            block_b = max(8, (bb // 8) * 8)

    num_blocks = pl.cdiv(B, block_b)
    B_pad = num_blocks * block_b
    if B_pad != B:
        # zero-padded rows produce a uniform softmax over zero inputs -> 0,
        # and are sliced off below; no NaNs.
        inputs = jnp.pad(inputs, ((0, B_pad - B), (0, 0), (0, 0)))

    b2 = b_omega.reshape(1, A)
    u2 = u_omega.reshape(1, A)

    out = pl.pallas_call(
        _self_attention_kernel,
        out_shape=jax.ShapeDtypeStruct((B_pad, H), inputs.dtype),
        grid_spec=pltpu.PrefetchScalarGridSpec(
            num_scalar_prefetch=0,
            grid=(num_blocks,),
            in_specs=[
                pl.BlockSpec((block_b, T, H), lambda i: (i, 0, 0)),
                # weights / bias / u are grid-invariant (constant index maps)
                pl.BlockSpec((H, A), lambda i: (0, 0)),
                pl.BlockSpec((1, A), lambda i: (0, 0)),
                pl.BlockSpec((1, A), lambda i: (0, 0)),
            ],
            out_specs=pl.BlockSpec((block_b, H), lambda i: (i, 0)),
        ),
        compiler_params=pltpu.CompilerParams(
            dimension_semantics=("parallel",),
        ),
    )(inputs, w_omega, b2, u2)

    return out[:B]


def _reference(inputs, w_omega, b_omega, u_omega):
    v = jnp.tanh(jnp.einsum("bth,ha->bta", inputs, w_omega) + b_omega)
    vu = jnp.einsum("bta,a->bt", v, u_omega)
    alphas = jax.nn.softmax(vu, axis=1)
    return jnp.sum(inputs * alphas[..., None], axis=1)


if __name__ == "__main__":
    # Small shapes consistent with the module: batch=2, seq=8, hidden=32, attn=16
    B, T, H, A = 2, 8, 32, 16
    key = jax.random.PRNGKey(0)
    k_x, k_w, k_b, k_u = jax.random.split(key, 4)

    inputs = jax.random.normal(k_x, (B, T, H), dtype=jnp.float32)
    # deterministic "normal_(mean=0, std=0.1)" style init
    w_omega = 0.1 * jax.random.normal(k_w, (H, A), dtype=jnp.float32)
    b_omega = 0.1 * jax.random.normal(k_b, (A,), dtype=jnp.float32)
    u_omega = 0.1 * jax.random.normal(k_u, (A,), dtype=jnp.float32)

    out = self_attention_layer(inputs, w_omega, b_omega, u_omega)
    out = jax.block_until_ready(out)

    ref = _reference(inputs, w_omega, b_omega, u_omega)
    assert out.shape == (B, H)
    # tolerance loosened slightly for the EUP approx-reciprocal softmax denom
    assert jnp.allclose(out, ref, atol=5e-3, rtol=5e-3), "mismatch vs reference"

    print("KERNEL_OK")
</pallas_src>

<mosaic_0001>
module attributes {stable_mosaic.version = 11 : i64} {
  func.func @_self_attention_kernel(%arg0: i32, %arg1: memref<2x8x32xf32, #tpu.memory_space<vmem>>, %arg2: memref<32x16xf32, #tpu.memory_space<vmem>>, %arg3: memref<1x16xf32, #tpu.memory_space<vmem>>, %arg4: memref<1x16xf32, #tpu.memory_space<vmem>>, %arg5: memref<2x32xf32, #tpu.memory_space<vmem>>) attributes {dimension_semantics = [#tpu.dimension_semantics<parallel>], iteration_bounds = array<i64: 1>, scalar_prefetch = 0 : i64, scratch_operands = 0 : i64, tpu.core_type = #tpu.core_type<tc>, window_params = [{transform_indices = @transform_0, window_bounds = array<i64: 2, 8, 32>}, {pipeline_mode = #tpu.pipeline_mode<synchronous>, transform_indices = @transform_1, window_bounds = array<i64: 32, 16>}, {pipeline_mode = #tpu.pipeline_mode<synchronous>, transform_indices = @transform_2, window_bounds = array<i64: 1, 16>}, {pipeline_mode = #tpu.pipeline_mode<synchronous>, transform_indices = @transform_3, window_bounds = array<i64: 1, 16>}, {transform_indices = @transform_4, window_bounds = array<i64: 2, 32>}]} {
    %c0 = arith.constant 0 : index
    %c0_0 = arith.constant 0 : index
    %c0_1 = arith.constant 0 : index
    %0 = vector.load %arg1[%c0, %c0_0, %c0_1] : memref<2x8x32xf32, #tpu.memory_space<vmem>>, vector<2x8x32xf32>
    %1 = vector.shape_cast %0 : vector<2x8x32xf32> to vector<16x32xf32>
    %c0_2 = arith.constant 0 : index
    %c0_3 = arith.constant 0 : index
    %2 = vector.load %arg2[%c0_2, %c0_3] : memref<32x16xf32, #tpu.memory_space<vmem>>, vector<32x16xf32>
    %cst = arith.constant dense<0.000000e+00> : vector<16x16xf32>
    %3 = tpu.matmul %1, %2, %cst {dimension_numbers = #tpu.dot_dimension_numbers<[1], [0], [0], [1], [0, 0, 1, 1], [], []>} : vector<16x32xf32>, vector<32x16xf32>, vector<16x16xf32> -> vector<16x16xf32>
    %c0_4 = arith.constant 0 : index
    %c0_5 = arith.constant 0 : index
    %4 = vector.load %arg3[%c0_4, %c0_5] : memref<1x16xf32, #tpu.memory_space<vmem>>, vector<1x16xf32>
    %5 = vector.broadcast %4 : vector<1x16xf32> to vector<16x16xf32>
    %6 = arith.addf %3, %5 : vector<16x16xf32>
    %7 = math.tanh %6 : vector<16x16xf32>
    %8 = vector.shape_cast %7 : vector<16x16xf32> to vector<2x8x16xf32>
    %c0_6 = arith.constant 0 : index
    %c0_7 = arith.constant 0 : index
    %9 = vector.load %arg4[%c0_6, %c0_7] : memref<1x16xf32, #tpu.memory_space<vmem>>, vector<1x16xf32>
    %10 = vector.shape_cast %9 : vector<1x16xf32> to vector<1x1x16xf32>
    %11 = vector.broadcast %10 : vector<1x1x16xf32> to vector<2x8x16xf32>
    %12 = arith.mulf %8, %11 : vector<2x8x16xf32>
    %cst_8 = arith.constant dense<0.000000e+00> : vector<2x8xf32>
    %13 = vector.multi_reduction <add>, %12, %cst_8 [2] : vector<2x8x16xf32> to vector<2x8xf32>
    %14 = vector.shape_cast %13 : vector<2x8xf32> to vector<2x8x1xf32>
    %cst_9 = arith.constant dense<0xFF800000> : vector<2x1xf32>
    %15 = vector.multi_reduction <maximumf>, %14, %cst_9 [1] : vector<2x8x1xf32> to vector<2x1xf32>
    %16 = vector.shape_cast %15 : vector<2x1xf32> to vector<2x1x1xf32>
    %17 = vector.broadcast %16 : vector<2x1x1xf32> to vector<2x8x1xf32>
    %18 = arith.subf %14, %17 : vector<2x8x1xf32>
    %19 = math.exp %18 : vector<2x8x1xf32>
    %cst_10 = arith.constant dense<0.000000e+00> : vector<2x1xf32>
    %20 = vector.multi_reduction <add>, %19, %cst_10 [1] : vector<2x8x1xf32> to vector<2x1xf32>
    %21 = vector.shape_cast %20 : vector<2x1xf32> to vector<2x1x1xf32>
    %22 = tpu.reciprocal %21 {approx = true} : vector<2x1x1xf32> -> vector<2x1x1xf32>
    %23 = vector.broadcast %22 : vector<2x1x1xf32> to vector<2x8x1xf32>
    %24 = arith.mulf %19, %23 : vector<2x8x1xf32>
    %25 = vector.broadcast %24 : vector<2x8x1xf32> to vector<2x8x32xf32>
    %26 = arith.mulf %0, %25 : vector<2x8x32xf32>
    %cst_11 = arith.constant dense<0.000000e+00> : vector<2x32xf32>
    %27 = vector.multi_reduction <add>, %26, %cst_11 [1] : vector<2x8x32xf32> to vector<2x32xf32>
    %c0_12 = arith.constant 0 : index
    %c0_13 = arith.constant 0 : index
    %28 = vector.load %arg5[%c0_12, %c0_13] : memref<2x32xf32, #tpu.memory_space<vmem>>, vector<2x32xf32>
    tpu.vector_store %arg5[%c0_12, %c0_13], %27 {strides = array<i32>} : memref<2x32xf32, #tpu.memory_space<vmem>>, vector<2x32xf32>,
    return
  }
  func.func @transform_0(%arg0: i32) -> (i32, i32, i32) {
    %c0_i32 = arith.constant 0 : i32
    %c0_i32_0 = arith.constant 0 : i32
    %c0_i32_1 = arith.constant 0 : i32
    return %arg0, %c0_i32, %c0_i32_0 : i32, i32, i32
  }
  func.func @transform_1(%arg0: i32) -> (i32, i32) {
    %c0_i32 = arith.constant 0 : i32
    %c0_i32_0 = arith.constant 0 : i32
    %c0_i32_1 = arith.constant 0 : i32
    return %c0_i32, %c0_i32_0 : i32, i32
  }
  func.func @transform_2(%arg0: i32) -> (i32, i32) {
    %c0_i32 = arith.constant 0 : i32
    %c0_i32_0 = arith.constant 0 : i32
    %c0_i32_1 = arith.constant 0 : i32
    return %c0_i32, %c0_i32_0 : i32, i32
  }
  func.func @transform_3(%arg0: i32) -> (i32, i32) {
    %c0_i32 = arith.constant 0 : i32
    %c0_i32_0 = arith.constant 0 : i32
    %c0_i32_1 = arith.constant 0 : i32
    return %c0_i32, %c0_i32_0 : i32, i32
  }
  func.func @transform_4(%arg0: i32) -> (i32, i32) {
    %c0_i32 = arith.constant 0 : i32
    %c0_i32_0 = arith.constant 0 : i32
    return %arg0, %c0_i32 : i32, i32
  }
}

</mosaic_0001>

<llo_original>
// kernel: tpu_custom_call.1
$region0: #{tpu_custom_call.1}
  #allocation0 [shape = 'u32[]', space=smem, size = 0x4, offset = 0x4, fixed_abs, tag = 'smem constant byte address 0x4 - core index']
  #allocation1 [shape = 'u32[144,128]{1,0:T(1,128)}', space=vmem, size = 0x12000, scoped, tag = 'internal scratch']
  %s0 = inlined_call_operand.vmem [shape: f32[2,8,32], index: 0, kind: input, shape index: {}]
  %s1 = inlined_call_operand.vmem [shape: f32[32,16], index: 1, kind: input, shape index: {}]
  %s2 = inlined_call_operand.vmem [shape: f32[1,16], index: 2, kind: input, shape index: {}]
  %s3 = inlined_call_operand.vmem [shape: f32[1,16], index: 3, kind: input, shape index: {}]
  %s4 = inlined_call_operand.hbm [shape: f32[2,32], index: 4, kind: output, shape index: {}]
  %s5 = sld [smem:[#allocation0]]
  $region26: #{tpu_custom_call.1} parent=0
    _
  %s7 = ssub.s32 1, %s5
  %s8 = scalar_select 0, %s7, %s5
  $region1: #{tpu_custom_call.1} parent=0
    #allocation2 [shape = 'u8[1024]{0}', space=vmem, size = 0x400, scoped, tag = 'output window, operand 0, single buffered']
    #allocation3 [shape = 's32[1]{0}', space=sflag, size = 0x4, scoped, tag = 'scoped memory for tpu_custom_call.1']
    %9 = vsyncpa [#allocation3], 0
    // Predicated region
    $region2: #{tpu_custom_call.1} parent=1 // pred_check
      _
    $region3: #{tpu_custom_call.1} parent=1 // pred_check_branch
      %11 = sbr.rel (0) target = $region5
    $region4: #{tpu_custom_call.1} parent=1 // pred_region
      _
    $region5: #{tpu_custom_call.1} parent=1 // pred_fallthru
      _
    // Predicated region
    $region6: #{tpu_custom_call.1} parent=1 // pred_check
      _
    $region7: #{tpu_custom_call.1} parent=1 // pred_check_branch
      %13 = sbr.rel (0) target = $region9
    $region8: #{tpu_custom_call.1} parent=1 // pred_region
      _
    $region9: #{tpu_custom_call.1} parent=1 // pred_fallthru
      _
    // Predicated region
    $region10: #{tpu_custom_call.1} parent=1 // pred_check
      _
    $region11: #{tpu_custom_call.1} parent=1 // pred_check_branch
      %15 = sbr.rel (0) target = $region13
    $region12: #{tpu_custom_call.1} parent=1 // pred_region
      _
    $region13: #{tpu_custom_call.1} parent=1 // pred_fallthru
      _
    // Predicated region
    $region14: #{tpu_custom_call.1} parent=1 // pred_check
      _
    $region15: #{tpu_custom_call.1} parent=1 // pred_check_branch
      %17 = sbr.rel (0) target = $region17
    $region16: #{tpu_custom_call.1} parent=1 // pred_region
      _
    $region17: #{tpu_custom_call.1} parent=1 // pred_fallthru
      _
    %v18 = vld [vmem:[%s0] sm:$0xff]
    %v19 = vld [vmem:[%s0 + $0x8] sm:$0xff]
    %v20 = vld [vmem:[%s1] sm:$0xff]
    %v21 = vld [vmem:[%s1 + $0x8] sm:$0xff]
    %v22 = vld [vmem:[%s1 + $0x10] sm:$0xff]
    %v23 = vld [vmem:[%s1 + $0x18] sm:$0xff]
    %v24 = vld [vmem:[%s2] sm:$0x1]
    %v26 = vlaneseq
    %v27 = vshrl.u32 %v26, 7
    %v28 = vsub.s32 0, %v27
    %v29 = vrot.slane %v24, %v28
    %vm31 = vcmask 261120
    %v33 = vsel %vm31, %v18, 0
    %v36 = vsel %vm31, %v19, 0
    %38 = vmatprep.subr.mxu0 0.0
    %39 = vmatpush1.msra.mxu0 %v20
    %40 = vmatprep.subr.mxu0 0.0
    %41 = vmatpush1.msra.mxu0 %v21
    %42 = vmatprep.subr.mxu0 0.0
    %43 = vmatpush1.msra.mxu0 %v22
    %44 = vmatprep.subr.mxu0 0.0
    %45 = vmatpush1.msra.mxu0 %v23
    %46 = vmatprep.subr.mxu0 0.0
    %47 = vmatpush1.msra.mxu0 0.0
    %48 = vmatprep.subr.mxu0 0.0
    %49 = vmatpush1.msra.mxu0 0.0
    %50 = vmatprep.subr.mxu0 0.0
    %51 = vmatpush1.msra.mxu0 0.0
    %52 = vmatprep.subr.mxu0 0.0
    %53 = vmatpush1.msra.mxu0 0.0
    %54 = vmatprep.subr.mxu0 0.0
    %55 = vmatpush1.msra.mxu0 0.0
    %56 = vmatprep.subr.mxu0 0.0
    %57 = vmatpush1.msra.mxu0 0.0
    %58 = vmatprep.subr.mxu0 0.0
    %59 = vmatpush1.msra.mxu0 0.0
    %60 = vmatprep.subr.mxu0 0.0
    %61 = vmatpush1.msra.mxu0 0.0
    %62 = vmatprep.subr.mxu0 0.0
    %63 = vmatpush1.msra.mxu0 0.0
    %64 = vmatprep.subr.mxu0 0.0
    %65 = vmatpush1.msra.mxu0 0.0
    %66 = vmatprep.subr.mxu0 0.0
    %67 = vmatpush1.msra.mxu0 0.0
    %68 = vmatprep.subr.mxu0 0.0
    %69 = vmatpush1.msra.mxu0 0.0
    %70 = vmatprep.subr.mxu0 0.0
    %71 = vmatpush1.msra.mxu0 0.0
    %72 = vmatprep.subr.mxu0 0.0
    %73 = vmatpush1.msra.mxu0 0.0
    %74 = vmatprep.subr.mxu0 0.0
    %75 = vmatpush1.msra.mxu0 0.0
    %76 = vmatprep.subr.mxu0 0.0
    %77 = vmatpush1.msra.mxu0 0.0
    %78 = vmatprep.subr.mxu0 0.0
    %79 = vmatpush1.msra.mxu0 0.0
    %80 = vmatprep.subr.mxu0 0.0
    %81 = vmatpush1.msra.mxu0 0.0
    %82 = vmatprep.subr.mxu0 0.0
    %83 = vmatpush1.msra.mxu0 0.0
    %84 = vmatprep.subr.mxu0 0.0
    %85 = vmatpush1.msra.mxu0 0.0
    %86 = vmatprep.subr.mxu0 0.0
    %87 = vmatpush1.msra.mxu0 0.0
    %88 = vmatprep.subr.mxu0 0.0
    %89 = vmatpush1.msra.mxu0 0.0
    %90 = vmatprep.subr.mxu0 0.0
    %91 = vmatpush1.msra.mxu0 0.0
    %92 = vmatprep.subr.mxu0 0.0
    %93 = vmatpush1.msra.mxu0 0.0
    %94 = vmatprep.subr.mxu0 0.0
    %95 = vmatpush1.msra.mxu0 0.0
    %96 = vmatprep.subr.mxu0 0.0
    %97 = vmatpush1.msra.mxu0 0.0
    %98 = vmatprep.subr.mxu0 0.0
    %99 = vmatpush1.msra.mxu0 0.0
    %100 = vmatprep.subr.mxu0 0.0
    %101 = vmatpush1.msra.mxu0 0.0
    %102 = vmatprep.mubr.f32.mxu0 0.0
    %103 = vmatmul.mubr.f32.gmra.mrb[0].mxu0 %v33
    %v104 = vpop.f32.mrb[0].mxu0
    %v105 = vadd.f32 %v29, %v104
    %v106 = vpop.f32.mrb[0].mxu0
    %107 = vmatprep.mubr.f32.mxu0 0.0
    %108 = vmatmul.mubr.f32.gmra.mrb[0].mxu0 %v36
    %v109 = vpop.f32.mrb[0].mxu0
    %v110 = vadd.f32 %v29, %v109
    %v111 = vpop.f32.mrb[0].mxu0
    %112 = vdwg.mxu0
    %v113 = vtanh.pop %v105
    %v114 = vtanh.pop %v110
    %v115 = vld [vmem:[%s3] sm:$0x1]
    %v117 = vlaneseq
    %v118 = vshrl.u32 %v117, 7
    %v119 = vsub.s32 0, %v118
    %v120 = vrot.slane %v115, %v119
    %v122 = vmul.f32 %v113, %v120
    %v123 = vmul.f32 %v114, %v120
    %vm124 = vcmask 130048
    %v125 = vsel %vm124, %v122, 0.0
    %126 = vadd.xlane.f32.xlu0 %v125
    %v127 = vpop.xlane.xlu0 %126
    %v128 = vsel %vm124, %v123, 0.0
    %129 = vadd.xlane.f32.xlu0 %v128
    %v130 = vpop.xlane.xlu0 %129
    %v131 = vrot.slane %v127, 4
    %v132 = vmax.f32 %v127, %v131
    %v133 = vrot.slane %v132, 2
    %v134 = vmax.f32 %v132, %v133
    %v135 = vrot.slane %v134, 1
    %v136 = vmax.f32 %v134, %v135
    %v137 = vrot.slane %v130, 4
    %v138 = vmax.f32 %v130, %v137
    %v139 = vrot.slane %v138, 2
    %v140 = vmax.f32 %v138, %v139
    %v141 = vrot.slane %v140, 1
    %v142 = vmax.f32 %v140, %v141
    %v143 = vsub.f32 %v127, %v136
    %v144 = vsub.f32 %v130, %v142
    %v145 = vmul.f32 %v143, 1.442695
    %v146 = vpow.pop %v145
    %v147 = vmul.f32 %v144, 1.442695
    %v148 = vpow.pop %v147
    %v149 = vrot.slane %v146, 4
    %v150 = vadd.f32 %v146, %v149
    %v151 = vrot.slane %v150, 2
    %v152 = vadd.f32 %v150, %v151
    %v153 = vrot.slane %v152, 1
    %v154 = vadd.f32 %v152, %v153
    %v155 = vrot.slane %v148, 4
    %v156 = vadd.f32 %v148, %v155
    %v157 = vrot.slane %v156, 2
    %v158 = vadd.f32 %v156, %v157
    %v159 = vrot.slane %v158, 1
    %v160 = vadd.f32 %v158, %v159
    %v161 = vrcp.pop %v154
    %v162 = vrcp.pop %v160
    %v163 = vmul.f32 %v146, %v161
    %v164 = vmul.f32 %v148, %v162
    %v165 = vmul.f32 %v18, %v163
    %v166 = vmul.f32 %v19, %v164
    %v167 = vsel %vm31, %v165, 0.0
    %v168 = vrot.slane %v167, 4
    %v169 = vadd.f32 %v167, %v168
    %v170 = vrot.slane %v169, 2
    %v171 = vadd.f32 %v169, %v170
    %v172 = vrot.slane %v171, 1
    %v173 = vadd.f32 %v171, %v172
    %v174 = vsel %vm31, %v166, 0.0
    %v175 = vrot.slane %v174, 4
    %v176 = vadd.f32 %v174, %v175
    %v177 = vrot.slane %v176, 2
    %v178 = vadd.f32 %v176, %v177
    %v179 = vrot.slane %v178, 1
    %v180 = vadd.f32 %v178, %v179
    %vm183 = vcmask 1041409
    %v184 = vsel %vm183, %v180, %v173
    %vm186 = vcmask 254976
    %187 = vst.msk [vmem:[#allocation2] sm:$0x3] %vm186, %v184
    // Predicated region
    $region18: #{tpu_custom_call.1} parent=1 // pred_check
      _
    $region19: #{tpu_custom_call.1} parent=1 // pred_check_branch
      %189 = sbr.rel (0) target = $region21
    $region20: #{tpu_custom_call.1} parent=1 // pred_region
      %s191 = ssub.s32 32, 32
      %192 = vsyncadd [#allocation3], %s191
      %s194 = sshll.u32 [#allocation2], 4
      %s195 = int_to_ptr.vmem [resolvable:$true] %s194
      %197 = dma.vmem_to_hbm [thread:$0]  %s195, 32, %s4, [#allocation3]
    $region21: #{tpu_custom_call.1} parent=1 // pred_fallthru
      _
    // Predicated region
    $region22: #{tpu_custom_call.1} parent=1 // pred_check
      _
    $region23: #{tpu_custom_call.1} parent=1 // pred_check_branch
      %199 = sbr.rel (0) target = $region25
    $region24: #{tpu_custom_call.1} parent=1 // pred_region
      %200 = dma.done [#allocation3], 32
    $region25: #{tpu_custom_call.1} parent=1 // pred_fallthru
      _
    %201 = vsyncpa [#allocation3], 1

</llo_original>
